<compile_context>
chip_gen: v5e
topology: v5e:2x2
jax: 0.10.0
libtpu: 0.0.40
codegen_flags: <defaults>
</compile_context>

<pallas_src>
import jax
import jax.numpy as jnp
from jax.experimental import pallas as pl
from jax.experimental.pallas import tpu as pltpu


def _ones_bmm_kernel(x_ref, o_ref):
    # x_ref: (B*M, K) slab, o_ref: (B*M, N) slab — whole problem in one tile.
    x = x_ref[...].astype(jnp.float32)                 # in-kernel cast (VPU, free)
    # bmm with an all-ones (K, N) RHS == row-sum over K, broadcast over N.
    row_sum = jnp.sum(x, axis=-1, keepdims=True)       # (B*M, 1)
    o_ref[...] = jnp.broadcast_to(row_sum, o_ref.shape).astype(o_ref.dtype)


def ones_bmm_pallas(x: jax.Array, n_out: int) -> jax.Array:
    """Computes bmm(x, ones(B, K, n_out)) without materializing the ones."""
    B, M, K = x.shape
    # Flatten to a single lane-padded 2-D slab: one (8,128) tile each way.
    x2 = x.reshape(B * M, K)
    out2 = pl.pallas_call(
        _ones_bmm_kernel,
        out_shape=jax.ShapeDtypeStruct((B * M, n_out), jnp.float32),
        # No grid: single step, full arrays resident in VMEM.
        in_specs=[pl.BlockSpec(memory_space=pltpu.MemorySpace.VMEM)],
        out_specs=pl.BlockSpec(memory_space=pltpu.MemorySpace.VMEM),
    )(x2)
    return out2.reshape(B, M, n_out)


def model_forward(x: jax.Array) -> jax.Array:
    """Mirror of Model.forward: v = bmm(x, ones(2, 2, 2))."""
    # ones(2, 2, 2) fixes B=2, K=2, N=2; the constant never leaves the kernel.
    B, M, K = x.shape
    assert B == 2 and K == 2, "ones(2, 2, 2) constrains batch and K to 2"
    return ones_bmm_pallas(x, n_out=2)


if __name__ == "__main__":
    key = jax.random.PRNGKey(0)
    # B=2 and K=2 are forced by the constant ones(2, 2, 2); M=2 matches the
    # small example in the reference script.
    x = jax.random.normal(key, (2, 2, 2), dtype=jnp.float32)

    v = model_forward(x)
    v = jax.block_until_ready(v)

    # Reference check against plain-JAX batched matmul with the ones RHS.
    ref = jnp.einsum("bmk,bkn->bmn", x, jnp.ones((2, 2, 2), jnp.float32))
    assert v.shape == (2, 2, 2), v.shape
    assert jnp.allclose(v, ref, atol=1e-5, rtol=1e-5), "mismatch vs reference"

    print("KERNEL_OK")
</pallas_src>

<mosaic_0001>
module attributes {stable_mosaic.version = 11 : i64} {
  func.func @_ones_bmm_kernel(%arg0: memref<4x2xf32, #tpu.memory_space<vmem>>, %arg1: memref<4x2xf32, #tpu.memory_space<vmem>>) attributes {dimension_semantics = [], scalar_prefetch = 0 : i64, scratch_operands = 0 : i64, tpu.core_type = #tpu.core_type<tc>} {
    %c0 = arith.constant 0 : index
    %c0_0 = arith.constant 0 : index
    %0 = vector.load %arg0[%c0, %c0_0] : memref<4x2xf32, #tpu.memory_space<vmem>>, vector<4x2xf32>
    %cst = arith.constant dense<0.000000e+00> : vector<4xf32>
    %1 = vector.multi_reduction <add>, %0, %cst [1] : vector<4x2xf32> to vector<4xf32>
    %2 = vector.shape_cast %1 : vector<4xf32> to vector<4x1xf32>
    %3 = vector.shape_cast %2 : vector<4x1xf32> to vector<4x1xf32>
    %4 = vector.broadcast %3 : vector<4x1xf32> to vector<4x2xf32>
    %c0_1 = arith.constant 0 : index
    %c0_2 = arith.constant 0 : index
    %5 = vector.load %arg1[%c0_1, %c0_2] : memref<4x2xf32, #tpu.memory_space<vmem>>, vector<4x2xf32>
    tpu.vector_store %arg1[%c0_1, %c0_2], %4 {strides = array<i32>} : memref<4x2xf32, #tpu.memory_space<vmem>>, vector<4x2xf32>,
    return
  }
}

</mosaic_0001>

<llo_original>
// kernel: tpu_custom_call.1
$region0: #{tpu_custom_call.1}
  #allocation0 [shape = 'u32[]', space=smem, size = 0x4, offset = 0x4, fixed_abs, tag = 'smem constant byte address 0x4 - core index']
  #allocation1 [shape = 'u32[72,128]{1,0:T(1,128)}', space=vmem, size = 0x9000, scoped, tag = 'internal scratch']
  %s0 = inlined_call_operand.vmem [shape: f32[4,2], index: 0, kind: input, shape index: {}]
  %s1 = inlined_call_operand.vmem [shape: f32[4,2], index: 1, kind: output, shape index: {}]
  %s2 = sld [smem:[#allocation0]]
  $region14: #{tpu_custom_call.1} parent=0
    _
  %s4 = ssub.s32 1, %s2
  %s5 = scalar_select 0, %s4, %s2
  // Predicated region
  $region2: #{tpu_custom_call.1} parent=0 // pred_check
    _
  $region3: #{tpu_custom_call.1} parent=0 // pred_check_branch
    %7 = sbr.rel (0) target = $region5
  $region4: #{tpu_custom_call.1} parent=0 // pred_region
    _
  $region5: #{tpu_custom_call.1} parent=0 // pred_fallthru
    _
  %v8 = vld [vmem:[%s0] sm:$0xf]
  %vm9 = vcmask 11264
  %v10 = vsel %vm9, %v8, 0.0
  %11 = vadd.xlane.f32.xlu0 %v10
  %v12 = vpop.xlane.xlu0 %11
  %13 = vst.msk [vmem:[%s1] sm:$0xf] %vm9, %v12
  // Predicated region
  $region6: #{tpu_custom_call.1} parent=0 // pred_check
    _
  $region7: #{tpu_custom_call.1} parent=0 // pred_check_branch
    %15 = sbr.rel (0) target = $region9
  $region8: #{tpu_custom_call.1} parent=0 // pred_region
    _
  $region9: #{tpu_custom_call.1} parent=0 // pred_fallthru
    _
  // Predicated region
  $region10: #{tpu_custom_call.1} parent=0 // pred_check
    _
  $region11: #{tpu_custom_call.1} parent=0 // pred_check_branch
    %17 = sbr.rel (0) target = $region13
  $region12: #{tpu_custom_call.1} parent=0 // pred_region
    _
  $region13: #{tpu_custom_call.1} parent=0 // pred_fallthru
    _

</llo_original>
